<compile_context>
chip_gen: v7x
topology: tpu7x:2x2x1
jax: 0.10.0
libtpu: 0.0.40
codegen_flags: <defaults>
</compile_context>

<pallas_src>
import math
import numpy as np
import jax
import jax.numpy as jnp
from jax.experimental import pallas as pl
from jax.experimental.pallas import tpu as pltpu

_BINOMIAL = {
    1: [1.0],
    2: [1.0, 1.0],
    3: [1.0, 2.0, 1.0],
    4: [1.0, 3.0, 3.0, 1.0],
    5: [1.0, 4.0, 6.0, 4.0, 1.0],
    6: [1.0, 5.0, 10.0, 10.0, 5.0, 1.0],
    7: [1.0, 6.0, 15.0, 20.0, 15.0, 6.0, 1.0],
}

_PAD_MODE = {"reflect": "reflect", "refl": "reflect",
             "replicate": "edge", "repl": "edge", "zero": "constant"}


def _fold_matrix(out_len, in_len, stride, pad_lo, pad_type, taps):
    """1-D (downsample ∘ blur ∘ pad) operator with the padding folded in, so the
    kernel consumes the *unpadded* input directly.  Applied as out = M @ x."""
    m = np.zeros((out_len, in_len), dtype=np.float64)
    for o in range(out_len):
        for t, tap in enumerate(taps):
            src = stride * o + t - pad_lo
            if pad_type in ("reflect", "refl"):
                if src < 0:
                    src = -src
                if src > in_len - 1:
                    src = 2 * (in_len - 1) - src
            elif pad_type in ("replicate", "repl"):
                src = min(max(src, 0), in_len - 1)
            elif src < 0 or src > in_len - 1:      # zero padding: contributes 0
                continue
            m[o, src] += float(tap)
    return m


def _vmem_capacity_bytes():
    try:
        info = pltpu.get_tpu_info()
        cap = int(getattr(info, "vmem_capacity_bytes", 0) or 0)
        if cap > 0:
            return cap
    except Exception:
        pass
    return 64 * 1024 * 1024   # conservative fallback (v7x); v5e/v6e have 128 MiB


def _pick_c_tile(nc, h, w, ho, wo, in_b, out_b, c_b, budget):
    """Pick the channel-slab size from the *real* per-step VMEM working set."""
    per_c = (3 * h * w * in_b          # 2x double-buffered input block + reshape headroom
             + 2 * ho * wo * out_b     # double-buffered output block
             + h * wo * (4 + c_b)      # W-pass f32 result + compute-dtype copy
             + ho * h * c_b            # dh broadcast
             + ho * wo * 4)            # H-pass f32 accumulator
    fixed = 2 * (ho * h + w * wo) * c_b + (1 << 20)   # resident dh/dwt + slack

    def per_step(ct):
        return ct * per_c + fixed

    c_fit = max(1, int((budget - fixed) // per_c)) if budget > fixed else 1
    # Keep >= 4 grid steps when possible so both v7x TensorCores get balanced,
    # pipelined work under dimension_semantics=("parallel",).
    c_cap = nc if nc < 4 else -(-nc // 4)
    c_want = int(max(1, min(c_fit, c_cap, nc)))
    # Prefer a divisor of nc (no pad copy); otherwise pad nc up to a multiple.
    div = max(d for d in range(1, c_want + 1) if nc % d == 0)
    if div * 2 >= c_want or div >= 8:
        return div, 0, per_step(div)
    pad = (-nc) % c_want
    return c_want, pad, per_step(c_want)


def _make_kernel(c_tile, h, w, ho, wo, cdt):
    def kernel(x_ref, dh_ref, dwt_ref, o_ref):
        xb = x_ref[...]                                  # (c_tile, h, w), native dtype
        if xb.dtype != cdt:
            xb = xb.astype(cdt)
        # --- W pass: one flat MXU matmul, M = c_tile*h, K = w, N = wo. ---
        t = jnp.dot(xb.reshape(c_tile * h, w), dwt_ref[...],
                    preferred_element_type=jnp.float32)   # (c_tile*h, wo) f32
        # Keep the intermediate in the compute dtype (halves VMEM/vregs for bf16).
        t3 = t.astype(cdt).reshape(c_tile, h, wo)
        # --- H pass: canonical batched (b,m,k)x(b,k,n); only dh is broadcast. ---
        dh_b = jnp.broadcast_to(dh_ref[...][None], (c_tile, ho, h))
        out = jax.lax.dot_general(dh_b, t3, (((2,), (1,)), ((0,), (0,))),
                                  preferred_element_type=jnp.float32)
        o_ref[...] = out.astype(o_ref.dtype)
    return kernel


def blurpool2d(x, channels, pad_type="reflect", filt_size=3, stride=2, pad_off=0):
    """Matches BlurPool2D.forward for NCHW input `x`."""
    assert x.shape[1] == channels
    n, c, h, w = x.shape
    pad_lo = int(1.0 * (filt_size - 1) / 2) + pad_off            # left / top
    pad_hi = int(math.ceil(1.0 * (filt_size - 1) / 2)) + pad_off  # right / bottom

    if filt_size == 1:
        # Identity filter: pure strided subsampling; no compute -> no kernel needed.
        if pad_off == 0:
            return x[:, :, ::stride, ::stride]
        xp = jnp.pad(x, ((0, 0), (0, 0), (pad_lo, pad_hi), (pad_lo, pad_hi)),
                     mode=_PAD_MODE[pad_type])
        return xp[:, :, ::stride, ::stride]

    if pad_type in ("reflect", "refl"):
        assert pad_lo < h and pad_hi < h and pad_lo < w and pad_hi < w

    hp, wp = h + pad_lo + pad_hi, w + pad_lo + pad_hi
    ho = (hp - filt_size) // stride + 1
    wo = (wp - filt_size) // stride + 1

    # Deterministic "parameters" (mirrors the registered `filt` buffer):
    # filt = outer(a, a)/sum == outer(taps, taps) with taps = a / sum(a).
    a = np.asarray(_BINOMIAL[filt_size], dtype=np.float64)
    taps = a / a.sum()

    # Compute dtype: bf16 stays bf16 (taps / edge tap-sums are exact in bf16, native
    # MXU path, half the HBM->VMEM bytes); everything else computes in f32.
    cdt = jnp.bfloat16 if x.dtype == jnp.bfloat16 else jnp.float32

    # Hoisted fold matrices (padding folded in).  dwt is pre-transposed so the W pass
    # is a canonical (M,K)x(K,N) matmul.
    dh = jnp.asarray(_fold_matrix(ho, h, stride, pad_lo, pad_type, taps), dtype=cdt)
    dwt = jnp.asarray(_fold_matrix(wo, w, stride, pad_lo, pad_type, taps).T, dtype=cdt)

    nc = n * c
    in_b = x.dtype.itemsize
    c_b = np.dtype(cdt).itemsize

    cap = _vmem_capacity_bytes()
    budget = cap // 6                         # generation-aware per-step budget
    c_tile, pad_nc, per_step = _pick_c_tile(nc, h, w, ho, wo, in_b, in_b, c_b, budget)

    x3 = x.reshape(nc, h, w)                  # leading-dim merge only (free)
    if pad_nc:
        # No good divisor of nc: pad the channel axis (one extra HBM copy) rather
        # than collapsing to c_tile = 1.
        x3 = jnp.pad(x3, ((0, pad_nc), (0, 0), (0, 0)))
    nc_p = nc + pad_nc
    grid = (nc_p // c_tile,)

    # vmem limit derived from the real working set (with headroom), capped below the
    # physical VMEM of the current generation.
    vmem_limit = int(min(cap - (8 << 20), max(32 << 20, 3 * per_step)))

    kernel = _make_kernel(c_tile, h, w, ho, wo, cdt)
    out3 = pl.pallas_call(
        kernel,
        out_shape=jax.ShapeDtypeStruct((nc_p, ho, wo), x.dtype),
        grid=grid,
        in_specs=[
            pl.BlockSpec((c_tile, h, w), lambda i: (i, 0, 0)),
            pl.BlockSpec((ho, h), lambda i: (0, 0)),   # constant block: DMA'd once, stays resident
            pl.BlockSpec((w, wo), lambda i: (0, 0)),   # constant block: DMA'd once, stays resident
        ],
        out_specs=pl.BlockSpec((c_tile, ho, wo), lambda i: (i, 0, 0)),
        compiler_params=pltpu.CompilerParams(
            dimension_semantics=("parallel",),
            vmem_limit_bytes=vmem_limit),
    )(x3, dh, dwt)

    if pad_nc:
        out3 = out3[:nc]
    return out3.reshape(n, c, ho, wo)


def _reference(x, channels, pad_type="reflect", filt_size=3, stride=2, pad_off=0):
    """Pure-JAX reference (depthwise conv), mirrors the PyTorch forward."""
    pad_lo = int(1.0 * (filt_size - 1) / 2) + pad_off
    pad_hi = int(math.ceil(1.0 * (filt_size - 1) / 2)) + pad_off
    xp = jnp.pad(x, ((0, 0), (0, 0), (pad_lo, pad_hi), (pad_lo, pad_hi)),
                 mode=_PAD_MODE[pad_type])
    a = np.asarray(_BINOMIAL[filt_size], dtype=np.float64)
    filt2d = a[:, None] * a[None, :]
    filt2d = (filt2d / filt2d.sum()).astype(np.float32)
    wgt = jnp.broadcast_to(jnp.asarray(filt2d, dtype=x.dtype),
                           (channels, 1, filt_size, filt_size))
    return jax.lax.conv_general_dilated(
        xp, wgt, window_strides=(stride, stride), padding="VALID",
        dimension_numbers=("NCHW", "OIHW", "NCHW"),
        feature_group_count=channels)


if __name__ == "__main__":
    key = jax.random.PRNGKey(0)
    N, C, H, W = 2, 4, 16, 16
    x = jax.random.normal(key, (N, C, H, W), dtype=jnp.float32)

    # Default module config: reflect pad, filt_size=3, stride=2.
    y = jax.block_until_ready(blurpool2d(x, channels=C))
    y_ref = jax.block_until_ready(_reference(x, channels=C))
    assert y.shape == (N, C, 8, 8), y.shape
    assert jnp.allclose(y, y_ref, atol=1e-5, rtol=1e-5), \
        float(jnp.max(jnp.abs(y - y_ref)))

    # Replicate padding + 5-tap filter exercises the folded-pad path.
    y2 = jax.block_until_ready(blurpool2d(x, channels=C, pad_type="replicate",
                                          filt_size=5, stride=2))
    y2_ref = jax.block_until_ready(_reference(x, channels=C, pad_type="replicate",
                                              filt_size=5, stride=2))
    assert jnp.allclose(y2, y2_ref, atol=1e-5, rtol=1e-5), \
        float(jnp.max(jnp.abs(y2 - y2_ref)))

    # bf16 path: no f32 upcast of the block, bf16 MXU operands + f32 accumulation.
    xb = x.astype(jnp.bfloat16)
    y3 = jax.block_until_ready(blurpool2d(xb, channels=C))
    y3_ref = jax.block_until_ready(_reference(xb.astype(jnp.float32), channels=C))
    assert y3.dtype == jnp.bfloat16
    assert jnp.allclose(y3.astype(jnp.float32), y3_ref, atol=3e-2, rtol=3e-2), \
        float(jnp.max(jnp.abs(y3.astype(jnp.float32) - y3_ref)))

    print("KERNEL_OK")
</pallas_src>

<mosaic_0001>
module attributes {stable_mosaic.version = 11 : i64} {
  func.func @kernel(%arg0: i32, %arg1: memref<2x16x16xf32, #tpu.memory_space<vmem>>, %arg2: memref<8x16xf32, #tpu.memory_space<vmem>>, %arg3: memref<16x8xf32, #tpu.memory_space<vmem>>, %arg4: memref<2x8x8xf32, #tpu.memory_space<vmem>>) attributes {dimension_semantics = [#tpu.dimension_semantics<parallel>], iteration_bounds = array<i64: 4>, scalar_prefetch = 0 : i64, scratch_operands = 0 : i64, tpu.core_type = #tpu.core_type<tc>, window_params = [{transform_indices = @transform_0, window_bounds = array<i64: 2, 16, 16>}, {pipeline_mode = #tpu.pipeline_mode<synchronous>, transform_indices = @transform_1, window_bounds = array<i64: 8, 16>}, {pipeline_mode = #tpu.pipeline_mode<synchronous>, transform_indices = @transform_2, window_bounds = array<i64: 16, 8>}, {transform_indices = @transform_3, window_bounds = array<i64: 2, 8, 8>}]} {
    %c0 = arith.constant 0 : index
    %c0_0 = arith.constant 0 : index
    %c0_1 = arith.constant 0 : index
    %0 = vector.load %arg1[%c0, %c0_0, %c0_1] : memref<2x16x16xf32, #tpu.memory_space<vmem>>, vector<2x16x16xf32>
    %1 = vector.shape_cast %0 : vector<2x16x16xf32> to vector<32x16xf32>
    %c0_2 = arith.constant 0 : index
    %c0_3 = arith.constant 0 : index
    %2 = vector.load %arg3[%c0_2, %c0_3] : memref<16x8xf32, #tpu.memory_space<vmem>>, vector<16x8xf32>
    %cst = arith.constant dense<0.000000e+00> : vector<32x8xf32>
    %3 = tpu.matmul %1, %2, %cst {dimension_numbers = #tpu.dot_dimension_numbers<[1], [0], [0], [1], [0, 0, 1, 1], [], []>} : vector<32x16xf32>, vector<16x8xf32>, vector<32x8xf32> -> vector<32x8xf32>
    %4 = vector.shape_cast %3 : vector<32x8xf32> to vector<2x16x8xf32>
    %c0_4 = arith.constant 0 : index
    %c0_5 = arith.constant 0 : index
    %5 = vector.load %arg2[%c0_4, %c0_5] : memref<8x16xf32, #tpu.memory_space<vmem>>, vector<8x16xf32>
    %6 = vector.shape_cast %5 : vector<8x16xf32> to vector<1x8x16xf32>
    %7 = vector.shape_cast %6 : vector<1x8x16xf32> to vector<1x8x16xf32>
    %8 = vector.broadcast %7 : vector<1x8x16xf32> to vector<2x8x16xf32>
    %cst_6 = arith.constant dense<0.000000e+00> : vector<2x8x8xf32>
    %9 = tpu.matmul %8, %4, %cst_6 {dimension_numbers = #tpu.dot_dimension_numbers<[2], [1], [1], [2], [0, 0, 0, 1, 1, 2], [0], [0]>} : vector<2x8x16xf32>, vector<2x16x8xf32>, vector<2x8x8xf32> -> vector<2x8x8xf32>
    %c0_7 = arith.constant 0 : index
    %c0_8 = arith.constant 0 : index
    %c0_9 = arith.constant 0 : index
    %10 = vector.load %arg4[%c0_7, %c0_8, %c0_9] : memref<2x8x8xf32, #tpu.memory_space<vmem>>, vector<2x8x8xf32>
    tpu.vector_store %arg4[%c0_7, %c0_8, %c0_9], %9 {strides = array<i32>} : memref<2x8x8xf32, #tpu.memory_space<vmem>>, vector<2x8x8xf32>,
    return
  }
  func.func @transform_0(%arg0: i32) -> (i32, i32, i32) {
    %c0_i32 = arith.constant 0 : i32
    %c0_i32_0 = arith.constant 0 : i32
    %c0_i32_1 = arith.constant 0 : i32
    return %arg0, %c0_i32, %c0_i32_0 : i32, i32, i32
  }
  func.func @transform_1(%arg0: i32) -> (i32, i32) {
    %c0_i32 = arith.constant 0 : i32
    %c0_i32_0 = arith.constant 0 : i32
    %c0_i32_1 = arith.constant 0 : i32
    return %c0_i32, %c0_i32_0 : i32, i32
  }
  func.func @transform_2(%arg0: i32) -> (i32, i32) {
    %c0_i32 = arith.constant 0 : i32
    %c0_i32_0 = arith.constant 0 : i32
    %c0_i32_1 = arith.constant 0 : i32
    return %c0_i32, %c0_i32_0 : i32, i32
  }
  func.func @transform_3(%arg0: i32) -> (i32, i32, i32) {
    %c0_i32 = arith.constant 0 : i32
    %c0_i32_0 = arith.constant 0 : i32
    %c0_i32_1 = arith.constant 0 : i32
    return %arg0, %c0_i32, %c0_i32_0 : i32, i32, i32
  }
}

</mosaic_0001>

<llo_original>
// kernel: tpu_custom_call.1
$region0: #{tpu_custom_call.1}
  #allocation0 [shape = 'u32[]', space=smem, size = 0x4, offset = 0x4, fixed_abs, tag = 'smem constant byte address 0x4 - core index']
  #allocation1 [shape = 'u32[144,128]{1,0:T(1,128)}', space=vmem, size = 0x12000, scoped, tag = 'internal scratch']
  %s0 = inlined_call_operand.hbm [shape: f32[8,16,16], index: 0, kind: input, shape index: {}]
  %s1 = inlined_call_operand.vmem [shape: f32[8,16], index: 1, kind: input, shape index: {}]
  %s2 = inlined_call_operand.vmem [shape: f32[16,8], index: 2, kind: input, shape index: {}]
  %s3 = inlined_call_operand.hbm [shape: f32[8,8,8], index: 3, kind: output, shape index: {}]
  %s4 = sld [smem:[#allocation0]]
  $region49: #{tpu_custom_call.1} parent=0
    _
  %s6 = ssub.s32 1, %s4
  %s7 = scalar_select 0, %s6, %s4
  $region1: #{tpu_custom_call.1} parent=0
    #allocation2 [shape = 'u8[32768]{0}', space=vmem, size = 0x8000, scoped, tag = 'input window, operand 0']
    #allocation3 [shape = 's32[2]{0}', space=sflag, size = 0x8, scoped, tag = 'scoped memory for tpu_custom_call.1']
    #allocation4 [shape = 's32[2]{0}', space=sflag, size = 0x8, scoped, tag = 'scoped memory for tpu_custom_call.1']
    #allocation5 [shape = 'u8[16384]{0}', space=vmem, size = 0x4000, scoped, tag = 'output window, operand 0']
    %8 = vsyncpa [#allocation3], 0
    %s9 = scalar_lea.sflag [#allocation3], 1
    %10 = vsyncpa %s9, 0
    %11 = vsyncpa [#allocation4], 0
    %s12 = scalar_lea.sflag [#allocation4], 1
    %13 = vsyncpa %s12, 0
    loop: start=0, step=1, limit=6
    $region2: #{tpu_custom_call.1} parent=1 // loop_pre_header
      _
    $region3: #{tpu_custom_call.1} parent=1 // loop_header
      %s15 = sphi 0, %s19
      %p16 = scmp.ge.s32.totalorder %s15, 6
      %s25 = sphi 0, %s27
      %s28 = sphi 0, %s25
      %s29 = sphi 0, %s28
      %s45 = sphi 0, %s29
      %s49 = sphi 0, %s49
      %s51 = sphi 0, %s49
      %s52 = sphi 0, %s51
      %s66 = sphi 0, %s52
      %s70 = sphi 0, %s70
      %s72 = sphi 0, %s70
      %s73 = sphi 0, %s72
      %s87 = sphi 0, %s73
      %s93 = sphi 0, %s95
      %s96 = sphi 0, %s93
      %s97 = sphi 0, %s96
      %s113 = sphi 0, %s97
    $region4: #{tpu_custom_call.1} parent=1 // loop_header_branch
      %18 = sbr.rel (%p16) target = $region8
    $region5: #{tpu_custom_call.1} parent=1 // loop_body
      %s20 = ssub.s32 %s15, 1
      %s21 = ssub.s32 %s15, 2
      %s22 = sadd.s32 %s15, 1
      %s23 = ssub.s32 %s15, %s22
      %p24 = scmp.eq.s32.totalorder %s23, 0
      %s26 = sadd.s32 %s25, 1
      %s27 = scalar_select %p24, %s25, %s26
      %p30 = pneg %p24
      %p31 = scmp.eq.s32.totalorder %s15, 3
      %p32 = por %p30, %p31
      %p33 = scmp.ne.s32.totalorder %s25, %s28
      %p34 = scmp.eq.s32.totalorder %s15, 0
      %p35 = por %p33, %p34
      %p36 = scmp.ne.s32.totalorder %s25, %s28
      %p37 = scmp.eq.s32.totalorder %s20, 3
      %p38 = por %p36, %p37
      %p39 = scmp.ne.s32.totalorder %s28, %s29
      %p40 = scmp.eq.s32.totalorder %s20, 0
      %p41 = por %p39, %p40
      %p42 = scmp.ne.s32.totalorder %s28, %s29
      %p43 = scmp.eq.s32.totalorder %s21, 3
      %p44 = por %p42, %p43
      %p46 = scmp.ne.s32.totalorder %s29, %s45
      %p47 = scmp.eq.s32.totalorder %s21, 0
      %p48 = por %p46, %p47
      %s50 = sadd.s32 %s49, 1
      %p53 = scmp.eq.s32.totalorder %s15, 3
      %p54 = scmp.ne.s32.totalorder %s49, %s51
      %p55 = scmp.eq.s32.totalorder %s15, 0
      %p56 = por %p54, %p55
      %p57 = scmp.ne.s32.totalorder %s49, %s51
      %p58 = scmp.eq.s32.totalorder %s20, 3
      %p59 = por %p57, %p58
      %p60 = scmp.ne.s32.totalorder %s51, %s52
      %p61 = scmp.eq.s32.totalorder %s20, 0
      %p62 = por %p60, %p61
      %p63 = scmp.ne.s32.totalorder %s51, %s52
      %p64 = scmp.eq.s32.totalorder %s21, 3
      %p65 = por %p63, %p64
      %p67 = scmp.ne.s32.totalorder %s52, %s66
      %p68 = scmp.eq.s32.totalorder %s21, 0
      %p69 = por %p67, %p68
      %s71 = sadd.s32 %s70, 1
      %p74 = scmp.eq.s32.totalorder %s15, 3
      %p75 = scmp.ne.s32.totalorder %s70, %s72
      %p76 = scmp.eq.s32.totalorder %s15, 0
      %p77 = por %p75, %p76
      %p78 = scmp.ne.s32.totalorder %s70, %s72
      %p79 = scmp.eq.s32.totalorder %s20, 3
      %p80 = por %p78, %p79
      %p81 = scmp.ne.s32.totalorder %s72, %s73
      %p82 = scmp.eq.s32.totalorder %s20, 0
      %p83 = por %p81, %p82
      %p84 = scmp.ne.s32.totalorder %s72, %s73
      %p85 = scmp.eq.s32.totalorder %s21, 3
      %p86 = por %p84, %p85
      %p88 = scmp.ne.s32.totalorder %s73, %s87
      %p89 = scmp.eq.s32.totalorder %s21, 0
      %p90 = por %p88, %p89
      %s91 = ssub.s32 %s15, %s22
      %p92 = scmp.eq.s32.totalorder %s91, 0
      %s94 = sadd.s32 %s93, 1
      %s95 = scalar_select %p92, %s93, %s94
      %p98 = pneg %p92
      %p99 = scmp.eq.s32.totalorder %s15, 3
      %p100 = por %p98, %p99
      %p101 = scmp.ne.s32.totalorder %s93, %s96
      %p102 = scmp.eq.s32.totalorder %s15, 0
      %p103 = por %p101, %p102
      %p104 = scmp.ne.s32.totalorder %s93, %s96
      %p105 = scmp.eq.s32.totalorder %s20, 3
      %p106 = por %p104, %p105
      %p107 = scmp.ne.s32.totalorder %s96, %s97
      %p108 = scmp.eq.s32.totalorder %s20, 0
      %p109 = por %p107, %p108
      %p110 = scmp.ne.s32.totalorder %s96, %s97
      %p111 = scmp.eq.s32.totalorder %s21, 3
      %p112 = por %p110, %p111
      %p114 = scmp.ne.s32.totalorder %s97, %s113
      %p115 = scmp.eq.s32.totalorder %s21, 0
      %p116 = por %p114, %p115
      %p117 = scmp.le.s32.totalorder 1, %s15
      %p118 = scmp.lt.s32.totalorder %s15, 5
      %p119 = pnand %p117, %p118
      %p120 = pneg %p119
      // Predicated region
      $region9: #{tpu_custom_call.1} parent=5 // pred_check
        _
      $region10: #{tpu_custom_call.1} parent=5 // pred_check_branch
        %122 = sbr.rel (%p119) target = $region12
      $region11: #{tpu_custom_call.1} parent=5 // pred_region
        %s123 = ssub.s32 %s15, 1
        // Predicated region
        $region13: #{tpu_custom_call.1} parent=11 // pred_check
          %p124 = pneg %p62
        $region14: #{tpu_custom_call.1} parent=11 // pred_check_branch
          %126 = sbr.rel (%p124) target = $region16
        $region15: #{tpu_custom_call.1} parent=11 // pred_region
          _
        $region16: #{tpu_custom_call.1} parent=11 // pred_fallthru
          _
        // Predicated region
        $region17: #{tpu_custom_call.1} parent=11 // pred_check
          %p127 = pneg %p83
        $region18: #{tpu_custom_call.1} parent=11 // pred_check_branch
          %129 = sbr.rel (%p127) target = $region20
        $region19: #{tpu_custom_call.1} parent=11 // pred_region
          _
        $region20: #{tpu_custom_call.1} parent=11 // pred_fallthru
          _
      $region12: #{tpu_custom_call.1} parent=5 // pred_fallthru
        _
      %p130 = scmp.lt.s32.totalorder %s15, 4
      // Predicated region
      $region21: #{tpu_custom_call.1} parent=5 // pred_check
        %p131 = pneg %p130
      $region22: #{tpu_custom_call.1} parent=5 // pred_check_branch
        %133 = sbr.rel (%p131) target = $region24
      $region23: #{tpu_custom_call.1} parent=5 // pred_region
        // Predicated region
        $region25: #{tpu_custom_call.1} parent=23 // pred_check
          %p134 = pneg %p35
        $region26: #{tpu_custom_call.1} parent=23 // pred_check_branch
          %136 = sbr.rel (%p134) target = $region28
        $region27: #{tpu_custom_call.1} parent=23 // pred_region
          %s137 = sand.u32 %s25, 1
          %s138 = scalar_lea.sflag [#allocation3], %s137
          %s139 = sand.u32 %s25, 1
          %s140 = smul.addr %s139, 32
          %s141 = scalar_lea.vmem [#allocation2], %s140
          %s142 = smul.u32 2, %s15
          %s144 = ssub.s32 512, 512
          %145 = vsyncadd %s138, %s144
          %s146 = smul.addr %s142, 2
          %s147 = smul.addr %s146, 128
          %s148 = scalar_lea.hbm %s0, %s147
          %s149 = sshll.u32 %s141, 4
          %s150 = int_to_ptr.vmem [resolvable:$true] %s149
          %155 = dma.hbm_to_vmem [thread:$0]  %s148, 512, %s150, %s138, 128, 128, 8
        $region28: #{tpu_custom_call.1} parent=23 // pred_fallthru
          _
      $region24: #{tpu_custom_call.1} parent=5 // pred_fallthru
        _
      %p156 = scmp.le.s32.totalorder 1, %s15
      %p157 = scmp.lt.s32.totalorder %s15, 5
      %p158 = pnand %p156, %p157
      %p159 = pneg %p158
      // Predicated region
      $region29: #{tpu_custom_call.1} parent=5 // pred_check
        _
      $region30: #{tpu_custom_call.1} parent=5 // pred_check_branch
        %161 = sbr.rel (%p158) target = $region32
      $region31: #{tpu_custom_call.1} parent=5 // pred_region
        %s162 = ssub.s32 %s15, 1
        %s163 = sand.u32 %s28, 1
        %s164 = scalar_lea.sflag [#allocation3], %s163
        %s165 = sand.u32 %s28, 1
        %s166 = smul.addr %s165, 32
        %s167 = scalar_lea.vmem [#allocation2], %s166
        // Predicated region
        $region33: #{tpu_custom_call.1} parent=31 // pred_check
          %p168 = pneg %p41
        $region34: #{tpu_custom_call.1} parent=31 // pred_check_branch
          %170 = sbr.rel (%p168) target = $region36
        $region35: #{tpu_custom_call.1} parent=31 // pred_region
          %171 = dma.done %s164, 512
        $region36: #{tpu_custom_call.1} parent=31 // pred_fallthru
          _
        %s172 = sand.u32 %s28, 1
        %s173 = scalar_lea.sflag [#allocation3], %s172
        %s174 = sand.u32 %s28, 1
        %s175 = smul.addr %s174, 32
        %s176 = scalar_lea.vmem [#allocation2], %s175
        %p177 = pneg %p41
        %p178 = pneg %p38
        %p179 = pneg %p62
        %p180 = pneg %p59
        %p181 = pneg %p83
        %p182 = pneg %p80
        %p183 = pneg %p109
        %p184 = pneg %p106
        %s185 = sand.u32 %s96, 1
        %s186 = scalar_lea.sflag [#allocation4], %s185
        %s187 = sand.u32 %s96, 1
        %s188 = smul.addr %s187, 16
        %s189 = scalar_lea.vmem [#allocation5], %s188
        %s190 = smul.u32 2, %s20
        %s191 = smul.u32 2, %s20
        %v192 = vld [vmem:[%s167] sm:$0xff]
        %v193 = vld [vmem:[%s167 + $0x8] sm:$0xff]
        %v194 = vld [vmem:[%s167 + $0x10] sm:$0xff]
        %v195 = vld [vmem:[%s167 + $0x18] sm:$0xff]
        %v196 = vld [vmem:[%s2] sm:$0xff]
        %v197 = vld [vmem:[%s2 + $0x8] sm:$0xff]
        %vm198 = vcmask 130048
        %v200 = vsel %vm198, %v192, 0
        %v203 = vsel %vm198, %v193, 0
        %v206 = vsel %vm198, %v194, 0
        %v209 = vsel %vm198, %v195, 0
        %211 = vmatprep.subr.mxu0 0.0
        %212 = vmatpush1.msra.mxu0 %v196
        %213 = vmatprep.subr.mxu0 0.0
        %214 = vmatpush1.msra.mxu0 %v197
        %215 = vmatprep.subr.mxu0 0.0
        %216 = vmatpush1.msra.mxu0 0.0
        %217 = vmatprep.subr.mxu0 0.0
        %218 = vmatpush1.msra.mxu0 0.0
        %219 = vmatprep.subr.mxu0 0.0
        %220 = vmatpush1.msra.mxu0 0.0
        %221 = vmatprep.subr.mxu0 0.0
        %222 = vmatpush1.msra.mxu0 0.0
        %223 = vmatprep.subr.mxu0 0.0
        %224 = vmatpush1.msra.mxu0 0.0
        %225 = vmatprep.subr.mxu0 0.0
        %226 = vmatpush1.msra.mxu0 0.0
        %227 = vmatprep.subr.mxu0 0.0
        %228 = vmatpush1.msra.mxu0 0.0
        %229 = vmatprep.subr.mxu0 0.0
        %230 = vmatpush1.msra.mxu0 0.0
        %231 = vmatprep.subr.mxu0 0.0
        %232 = vmatpush1.msra.mxu0 0.0
        %233 = vmatprep.subr.mxu0 0.0
        %234 = vmatpush1.msra.mxu0 0.0
        %235 = vmatprep.subr.mxu0 0.0
        %236 = vmatpush1.msra.mxu0 0.0
        %237 = vmatprep.subr.mxu0 0.0
        %238 = vmatpush1.msra.mxu0 0.0
        %239 = vmatprep.subr.mxu0 0.0
        %240 = vmatpush1.msra.mxu0 0.0
        %241 = vmatprep.subr.mxu0 0.0
        %242 = vmatpush1.msra.mxu0 0.0
        %243 = vmatprep.subr.mxu0 0.0
        %244 = vmatpush1.msra.mxu0 0.0
        %245 = vmatprep.subr.mxu0 0.0
        %246 = vmatpush1.msra.mxu0 0.0
        %247 = vmatprep.subr.mxu0 0.0
        %248 = vmatpush1.msra.mxu0 0.0
        %249 = vmatprep.subr.mxu0 0.0
        %250 = vmatpush1.msra.mxu0 0.0
        %251 = vmatprep.subr.mxu0 0.0
        %252 = vmatpush1.msra.mxu0 0.0
        %253 = vmatprep.subr.mxu0 0.0
        %254 = vmatpush1.msra.mxu0 0.0
        %255 = vmatprep.subr.mxu0 0.0
        %256 = vmatpush1.msra.mxu0 0.0
        %257 = vmatprep.subr.mxu0 0.0
        %258 = vmatpush1.msra.mxu0 0.0
        %259 = vmatprep.subr.mxu0 0.0
        %260 = vmatpush1.msra.mxu0 0.0
        %261 = vmatprep.subr.mxu0 0.0
        %262 = vmatpush1.msra.mxu0 0.0
        %263 = vmatprep.subr.mxu0 0.0
        %264 = vmatpush1.msra.mxu0 0.0
        %265 = vmatprep.subr.mxu0 0.0
        %266 = vmatpush1.msra.mxu0 0.0
        %267 = vmatprep.subr.mxu0 0.0
        %268 = vmatpush1.msra.mxu0 0.0
        %269 = vmatprep.subr.mxu0 0.0
        %270 = vmatpush1.msra.mxu0 0.0
        %271 = vmatprep.subr.mxu0 0.0
        %272 = vmatpush1.msra.mxu0 0.0
        %273 = vmatprep.subr.mxu0 0.0
        %274 = vmatpush1.msra.mxu0 0.0
        %275 = vmatprep.mubr.f32.mxu0 0.0
        %276 = vmatmul.mubr.f32.gmra.mrb[0].mxu0 %v200
        %v277 = vpop.f32.mrb[0].mxu0
        %v278 = vadd.f32 0.0, %v277
        %v279 = vpop.f32.mrb[0].mxu0
        %280 = vmatprep.mubr.f32.mxu0 0.0
        %281 = vmatmul.mubr.f32.gmra.mrb[0].mxu0 %v203
        %v282 = vpop.f32.mrb[0].mxu0
        %v283 = vadd.f32 0.0, %v282
        %v284 = vpop.f32.mrb[0].mxu0
        %285 = vmatprep.mubr.f32.mxu0 0.0
        %286 = vmatmul.mubr.f32.gmra.mrb[0].mxu0 %v206
        %v287 = vpop.f32.mrb[0].mxu0
        %v288 = vadd.f32 0.0, %v287
        %v289 = vpop.f32.mrb[0].mxu0
        %290 = vmatprep.mubr.f32.mxu0 0.0
        %291 = vmatmul.mubr.f32.gmra.mrb[0].mxu0 %v209
        %v292 = vpop.f32.mrb[0].mxu0
        %v293 = vadd.f32 0.0, %v292
        %v294 = vpop.f32.mrb[0].mxu0
        %295 = vdwg.mxu0
        %v296 = vld [vmem:[%s1] sm:$0xff]
        %v298 = vsel %vm198, %v296, 0
        %300 = vmatprep.subr.mxu0 0.0
        %301 = vmatpush1.msra.mxu0 %v278
        %302 = vmatprep.subr.mxu0 0.0
        %303 = vmatpush1.msra.mxu0 %v283
        %304 = vmatprep.subr.mxu0 0.0
        %305 = vmatpush1.msra.mxu0 0.0
        %306 = vmatprep.subr.mxu0 0.0
        %307 = vmatpush1.msra.mxu0 0.0
        %308 = vmatprep.subr.mxu0 0.0
        %309 = vmatpush1.msra.mxu0 0.0
        %310 = vmatprep.subr.mxu0 0.0
        %311 = vmatpush1.msra.mxu0 0.0
        %312 = vmatprep.subr.mxu0 0.0
        %313 = vmatpush1.msra.mxu0 0.0
        %314 = vmatprep.subr.mxu0 0.0
        %315 = vmatpush1.msra.mxu0 0.0
        %316 = vmatprep.subr.mxu0 0.0
        %317 = vmatpush1.msra.mxu0 0.0
        %318 = vmatprep.subr.mxu0 0.0
        %319 = vmatpush1.msra.mxu0 0.0
        %320 = vmatprep.subr.mxu0 0.0
        %321 = vmatpush1.msra.mxu0 0.0
        %322 = vmatprep.subr.mxu0 0.0
        %323 = vmatpush1.msra.mxu0 0.0
        %324 = vmatprep.subr.mxu0 0.0
        %325 = vmatpush1.msra.mxu0 0.0
        %326 = vmatprep.subr.mxu0 0.0
        %327 = vmatpush1.msra.mxu0 0.0
        %328 = vmatprep.subr.mxu0 0.0
        %329 = vmatpush1.msra.mxu0 0.0
        %330 = vmatprep.subr.mxu0 0.0
        %331 = vmatpush1.msra.mxu0 0.0
        %332 = vmatprep.subr.mxu0 0.0
        %333 = vmatpush1.msra.mxu0 0.0
        %334 = vmatprep.subr.mxu0 0.0
        %335 = vmatpush1.msra.mxu0 0.0
        %336 = vmatprep.subr.mxu0 0.0
        %337 = vmatpush1.msra.mxu0 0.0
        %338 = vmatprep.subr.mxu0 0.0
        %339 = vmatpush1.msra.mxu0 0.0
        %340 = vmatprep.subr.mxu0 0.0
        %341 = vmatpush1.msra.mxu0 0.0
        %342 = vmatprep.subr.mxu0 0.0
        %343 = vmatpush1.msra.mxu0 0.0
        %344 = vmatprep.subr.mxu0 0.0
        %345 = vmatpush1.msra.mxu0 0.0
        %346 = vmatprep.subr.mxu0 0.0
        %347 = vmatpush1.msra.mxu0 0.0
        %348 = vmatprep.subr.mxu0 0.0
        %349 = vmatpush1.msra.mxu0 0.0
        %350 = vmatprep.subr.mxu0 0.0
        %351 = vmatpush1.msra.mxu0 0.0
        %352 = vmatprep.subr.mxu0 0.0
        %353 = vmatpush1.msra.mxu0 0.0
        %354 = vmatprep.subr.mxu0 0.0
        %355 = vmatpush1.msra.mxu0 0.0
        %356 = vmatprep.subr.mxu0 0.0
        %357 = vmatpush1.msra.mxu0 0.0
        %358 = vmatprep.subr.mxu0 0.0
        %359 = vmatpush1.msra.mxu0 0.0
        %360 = vmatprep.subr.mxu0 0.0
        %361 = vmatpush1.msra.mxu0 0.0
        %362 = vmatprep.subr.mxu0 0.0
        %363 = vmatpush1.msra.mxu0 0.0
        %364 = vmatprep.mubr.f32.mxu0 0.0
        %365 = vmatmul.mubr.f32.gmra.mrb[0].mxu0 %v298
        %v366 = vpop.f32.mrb[0].mxu0
        %v367 = vadd.f32 0.0, %v366
        %v368 = vpop.f32.mrb[0].mxu0
        %369 = vdwg.mxu0
        %370 = vmatprep.subr.mxu0 0.0
        %371 = vmatpush1.msra.mxu0 %v288
        %372 = vmatprep.subr.mxu0 0.0
        %373 = vmatpush1.msra.mxu0 %v293
        %374 = vmatprep.subr.mxu0 0.0
        %375 = vmatpush1.msra.mxu0 0.0
        %376 = vmatprep.subr.mxu0 0.0
        %377 = vmatpush1.msra.mxu0 0.0
        %378 = vmatprep.subr.mxu0 0.0
        %379 = vmatpush1.msra.mxu0 0.0
        %380 = vmatprep.subr.mxu0 0.0
        %381 = vmatpush1.msra.mxu0 0.0
        %382 = vmatprep.subr.mxu0 0.0
        %383 = vmatpush1.msra.mxu0 0.0
        %384 = vmatprep.subr.mxu0 0.0
        %385 = vmatpush1.msra.mxu0 0.0
        %386 = vmatprep.subr.mxu0 0.0
        %387 = vmatpush1.msra.mxu0 0.0
        %388 = vmatprep.subr.mxu0 0.0
        %389 = vmatpush1.msra.mxu0 0.0
        %390 = vmatprep.subr.mxu0 0.0
        %391 = vmatpush1.msra.mxu0 0.0
        %392 = vmatprep.subr.mxu0 0.0
        %393 = vmatpush1.msra.mxu0 0.0
        %394 = vmatprep.subr.mxu0 0.0
        %395 = vmatpush1.msra.mxu0 0.0
        %396 = vmatprep.subr.mxu0 0.0
        %397 = vmatpush1.msra.mxu0 0.0
        %398 = vmatprep.subr.mxu0 0.0
        %399 = vmatpush1.msra.mxu0 0.0
        %400 = vmatprep.subr.mxu0 0.0
        %401 = vmatpush1.msra.mxu0 0.0
        %402 = vmatprep.subr.mxu0 0.0
        %403 = vmatpush1.msra.mxu0 0.0
        %404 = vmatprep.subr.mxu0 0.0
        %405 = vmatpush1.msra.mxu0 0.0
        %406 = vmatprep.subr.mxu0 0.0
        %407 = vmatpush1.msra.mxu0 0.0
        %408 = vmatprep.subr.mxu0 0.0
        %409 = vmatpush1.msra.mxu0 0.0
        %410 = vmatprep.subr.mxu0 0.0
        %411 = vmatpush1.msra.mxu0 0.0
        %412 = vmatprep.subr.mxu0 0.0
        %413 = vmatpush1.msra.mxu0 0.0
        %414 = vmatprep.subr.mxu0 0.0
        %415 = vmatpush1.msra.mxu0 0.0
        %416 = vmatprep.subr.mxu0 0.0
        %417 = vmatpush1.msra.mxu0 0.0
        %418 = vmatprep.subr.mxu0 0.0
        %419 = vmatpush1.msra.mxu0 0.0
        %420 = vmatprep.subr.mxu0 0.0
        %421 = vmatpush1.msra.mxu0 0.0
        %422 = vmatprep.subr.mxu0 0.0
        %423 = vmatpush1.msra.mxu0 0.0
        %424 = vmatprep.subr.mxu0 0.0
        %425 = vmatpush1.msra.mxu0 0.0
        %426 = vmatprep.subr.mxu0 0.0
        %427 = vmatpush1.msra.mxu0 0.0
        %428 = vmatprep.subr.mxu0 0.0
        %429 = vmatpush1.msra.mxu0 0.0
        %430 = vmatprep.subr.mxu0 0.0
        %431 = vmatpush1.msra.mxu0 0.0
        %432 = vmatprep.subr.mxu0 0.0
        %433 = vmatpush1.msra.mxu0 0.0
        %434 = vmatprep.mubr.f32.mxu0 0.0
        %435 = vmatmul.mubr.f32.gmra.mrb[0].mxu0 %v298
        %v436 = vpop.f32.mrb[0].mxu0
        %v437 = vadd.f32 0.0, %v436
        %v438 = vpop.f32.mrb[0].mxu0
        %439 = vdwg.mxu0
        %vm440 = vcmask 64512
        %441 = vst.msk [vmem:[%s189] sm:$0xff] %vm440, %v367
        %442 = vst.msk [vmem:[%s189 + $0x8] sm:$0xff] %vm440, %v437
        %s443 = sand.u32 %s96, 1
        %s444 = scalar_lea.sflag [#allocation4], %s443
        %s445 = sand.u32 %s96, 1
        %s446 = smul.addr %s445, 16
        %s447 = scalar_lea.vmem [#allocation5], %s446
        // Predicated region
        $region37: #{tpu_custom_call.1} parent=31 // pred_check
          %p448 = pneg %p106
        $region38: #{tpu_custom_call.1} parent=31 // pred_check_branch
          %450 = sbr.rel (%p448) target = $region40
        $region39: #{tpu_custom_call.1} parent=31 // pred_region
          %s451 = smul.u32 2, %s20
          %s453 = ssub.s32 256, 256
          %454 = vsyncadd %s444, %s453
          %s455 = smul.addr %s451, 128
          %s456 = scalar_lea.hbm %s3, %s455
          %s457 = sshll.u32 %s447, 4
          %s458 = int_to_ptr.vmem [resolvable:$true] %s457
          %463 = dma.vmem_to_hbm [thread:$0]  %s458, 256, %s456, %s444, 128, 128, 8
        $region40: #{tpu_custom_call.1} parent=31 // pred_fallthru
          _
      $region32: #{tpu_custom_call.1} parent=5 // pred_fallthru
        _
      %p464 = scmp.le.s32.totalorder 2, %s15
      // Predicated region
      $region41: #{tpu_custom_call.1} parent=5 // pred_check
        %p465 = pneg %p464
      $region42: #{tpu_custom_call.1} parent=5 // pred_check_branch
        %467 = sbr.rel (%p465) target = $region44
      $region43: #{tpu_custom_call.1} parent=5 // pred_region
        %s468 = ssub.s32 %s15, 2
        // Predicated region
        $region45: #{tpu_custom_call.1} parent=43 // pred_check
          %p469 = pneg %p112
        $region46: #{tpu_custom_call.1} parent=43 // pred_check_branch
          %471 = sbr.rel (%p469) target = $region48
        $region47: #{tpu_custom_call.1} parent=43 // pred_region
          %s472 = sand.u32 %s97, 1
          %s473 = scalar_lea.sflag [#allocation4], %s472
          %s474 = sand.u32 %s97, 1
          %s475 = smul.addr %s474, 16
          %s476 = scalar_lea.vmem [#allocation5], %s475
          %477 = dma.done %s473, 256
        $region48: #{tpu_custom_call.1} parent=43 // pred_fallthru
          _
      $region44: #{tpu_custom_call.1} parent=5 // pred_fallthru
        _
    $region6: #{tpu_custom_call.1} parent=1 // loop_footer
      %s19 = sadd.s32 1, %s15
    $region7: #{tpu_custom_call.1} parent=1 // loop_footer_branch
      %14 = sbr.rel target = $region3
    $region8: #{tpu_custom_call.1} parent=1 // loop_exit
      _
    %478 = vsyncpa [#allocation3], 1
    %s479 = scalar_lea.sflag [#allocation3], 1
    %480 = vsyncpa %s479, 1
    %481 = vsyncpa [#allocation4], 1
    %s482 = scalar_lea.sflag [#allocation4], 1
    %483 = vsyncpa %s482, 1

</llo_original>
